<compile_context>
chip_gen: v5e
topology: v5e:2x2
jax: 0.10.0
libtpu: 0.0.40
codegen_flags: <defaults>
</compile_context>

<pallas_src>
import functools

import jax
import jax.numpy as jnp
from jax import lax
from jax.experimental import pallas as pl
from jax.experimental.pallas import tpu as pltpu

_LABEL_SHIFT = 1 << 16          # packed key = col * SHIFT + label (labels < 65536)
_EPS = 1e-8                     # matches the numpy spec's  x / (||x|| + 1e-8)


# ---------------------------------------------------------------------------
# small shape helpers (padding uses zeros, which is a no-op for matmul /
# L2 norms; padded train columns are explicitly masked inside the kNN kernel)
# ---------------------------------------------------------------------------
def _round_up(x, m):
    return ((x + m - 1) // m) * m


def _pad2(x, rows, cols):
    return jnp.pad(x, ((0, rows - x.shape[0]), (0, cols - x.shape[1])))


# ---------------------------------------------------------------------------
# Encoder feature extraction ("extract_features"): deterministic linear
# encoder  features = flatten(x) @ W + b.  bf16 operands, f32 MXU
# accumulation directly into the resident f32 output tile (no acc scratch);
# bias added on the last k step.  Reduction axis (K) last and "arbitrary".
# ---------------------------------------------------------------------------
def encoder_kernel(x_ref, w_ref, b_ref, o_ref):
    @pl.when(pl.program_id(2) == 0)
    def _():
        o_ref[...] = jnp.zeros_like(o_ref)

    o_ref[...] += jnp.dot(x_ref[...], w_ref[...],
                          preferred_element_type=jnp.float32)

    @pl.when(pl.program_id(2) == pl.num_programs(2) - 1)
    def _():
        o_ref[...] += b_ref[...]          # (1, tn) broadcast over (tm, tn)


def extract_features(x_nchw, w, b, *, tm=None, tn=256, tk=1024):
    n = x_nchw.shape[0]
    d_in, d_feat = w.shape
    x_flat = x_nchw.reshape(n, d_in)

    # tm=256 fills the 256-wide MXU edge on v6e/v7x; harmless on v5e at these
    # sizes.  bf16 blocks -> second-minor dims kept multiples of 16.
    tm = tm if tm is not None else min(256, _round_up(n, 16))
    tk = min(tk, _round_up(d_in, 128))
    tn = min(tn, _round_up(d_feat, 128))
    m_p = _round_up(n, tm)
    k_p = _round_up(d_in, tk)
    n_p = _round_up(d_feat, tn)

    x_p = _pad2(x_flat.astype(jnp.bfloat16), m_p, k_p)
    w_p = _pad2(w.astype(jnp.bfloat16), k_p, n_p)
    b_p = jnp.zeros((1, n_p), jnp.float32).at[0, :d_feat].set(
        b.astype(jnp.float32))

    out = pl.pallas_call(
        encoder_kernel,
        out_shape=jax.ShapeDtypeStruct((m_p, n_p), jnp.float32),
        grid=(m_p // tm, n_p // tn, k_p // tk),
        in_specs=[
            pl.BlockSpec((tm, tk), lambda i, j, k: (i, k)),
            pl.BlockSpec((tk, tn), lambda i, j, k: (k, j)),
            pl.BlockSpec((1, tn), lambda i, j, k: (0, j)),
        ],
        out_specs=pl.BlockSpec((tm, tn), lambda i, j, k: (i, j)),
        compiler_params=pltpu.CompilerParams(
            dimension_semantics=("parallel", "parallel", "arbitrary")),
    )(x_p, w_p, b_p)
    return out[:n, :d_feat]


# ---------------------------------------------------------------------------
# One-time L2 normalization kernels (hoisted out of the kNN loop).
# f32 math, rsqrt on the EUP, output cast to the matmul dtype (bf16).
# Train side writes transposed (d, tile) blocks so no separate XLA transpose
# pass over the train features is needed.
# ---------------------------------------------------------------------------
def l2norm_kernel(x_ref, o_ref):
    x = x_ref[...]
    ss = jnp.sum(x * x, axis=1, keepdims=True)
    o_ref[...] = (x * lax.rsqrt(ss + _EPS * _EPS)).astype(o_ref.dtype)


def l2_normalize(x, *, tile, out_dtype=jnp.bfloat16):
    # callers pass shapes already padded: rows % tile == 0, cols % 128 == 0
    n, d = x.shape
    return pl.pallas_call(
        l2norm_kernel,
        out_shape=jax.ShapeDtypeStruct((n, d), out_dtype),
        grid=(n // tile,),
        in_specs=[pl.BlockSpec((tile, d), lambda i: (i, 0))],
        out_specs=pl.BlockSpec((tile, d), lambda i: (i, 0)),
        compiler_params=pltpu.CompilerParams(
            dimension_semantics=("parallel",)),
    )(x.astype(jnp.float32))


def l2normT_kernel(x_ref, o_ref):
    x = x_ref[...]                                 # (tile, d) f32
    ss = jnp.sum(x * x, axis=1, keepdims=True)
    y = x * lax.rsqrt(ss + _EPS * _EPS)
    o_ref[...] = y.T.astype(o_ref.dtype)           # XLU transpose -> (d, tile)


def l2_normalize_transposed(x, *, tile, out_dtype=jnp.bfloat16):
    # callers pass rows % tile == 0, tile % 128 == 0, cols % 128 == 0
    n, d = x.shape
    return pl.pallas_call(
        l2normT_kernel,
        out_shape=jax.ShapeDtypeStruct((d, n), out_dtype),
        grid=(n // tile,),
        in_specs=[pl.BlockSpec((tile, d), lambda i: (i, 0))],
        out_specs=pl.BlockSpec((d, tile), lambda i: (0, i)),
        compiler_params=pltpu.CompilerParams(
            dimension_semantics=("parallel",)),
    )(x.astype(jnp.float32))


# ---------------------------------------------------------------------------
# kNN evaluation: 2-D grid (test tiles x train tiles), online first-argmax.
# Per train tile: one MXU matmul, one max reduction, one packed-key min
# (col * 2^16 + label) -> fused argmax + label gather, then a running
# (max_sim, best_label) update in VMEM scratch. Finalized on the last tile.
# Column-only quantities (iota / valid mask / packed key base) are computed
# at shape (1, tt) and broadcast against the (tq, tt) similarities.
# ---------------------------------------------------------------------------
def knn_kernel(test_f_ref, train_ft_ref, train_y_ref, test_y_ref, o_ref,
               m_scratch, lab_scratch, *, ntr):
    t = pl.program_id(1)
    tt = train_y_ref.shape[-1]

    @pl.when(t == 0)
    def _():
        m_scratch[...] = jnp.full(m_scratch.shape, -jnp.inf, jnp.float32)
        lab_scratch[...] = jnp.zeros(lab_scratch.shape, jnp.int32)

    # column-only math at (1, tt): lane iota, padded-column mask, packed key
    col = lax.broadcasted_iota(jnp.int32, (1, tt), 1)
    valid = (col + t * tt) < ntr                                 # (1, tt)
    key_base = col * _LABEL_SHIFT + train_y_ref[...]             # (1, tt)

    # cosine similarities for this (test, train) tile pair: bf16 operands,
    # f32 MXU accumulation; train features arrive pre-transposed (d, tt).
    sims = jnp.dot(test_f_ref[...], train_ft_ref[...],
                   preferred_element_type=jnp.float32)           # (tq, tt)
    sims = jnp.where(valid, sims, -jnp.inf)

    # fused first-argmax + label gather: one max + one min reduction per tile
    local_max = jnp.max(sims, axis=1, keepdims=True)             # (tq, 1)
    key = jnp.where(sims >= local_max, key_base, jnp.int32(2**31 - 1))
    local_key = jnp.min(key, axis=1, keepdims=True)              # (tq, 1)
    local_lab = jnp.bitwise_and(local_key, _LABEL_SHIFT - 1)

    better = local_max > m_scratch[...]                          # strict > keeps
    lab_scratch[...] = jnp.where(better, local_lab, lab_scratch[...])  # first max
    m_scratch[...] = jnp.where(better, local_max, m_scratch[...])

    @pl.when(t == pl.num_programs(1) - 1)
    def _():
        o_ref[...] = (lab_scratch[...] == test_y_ref[...]).astype(jnp.float32)


def knn_evaluation(train_features, train_labels, test_features, test_labels,
                   *, tq=None, tt=None, sim_dtype=jnp.bfloat16):
    ntr, d = train_features.shape
    nte = test_features.shape[0]
    d_p = _round_up(d, 128)

    # train tile: large enough to amortize per-grid-step overhead, small
    # enough that (tq,tt) f32 sims + i32 keys + double-buffered bf16 inputs
    # stay far below v7x's 64 MiB physical VMEM.
    if tt is None:
        tt = min(2048, _round_up(ntr, 128))
    assert tt <= 32768, "packed key col*2^16 must stay inside int32"

    if tq is None:
        tq = min(512, _round_up(nte, 16))
        # v7x megacore: keep >= 2 test-row tiles once the test set is big
        # enough so both TensorCores get work on the "parallel" q axis.
        if nte >= 32 and _round_up(nte, tq) == tq:
            tq = _round_up((tq + 1) // 2, 16)
    nte_p = _round_up(nte, tq)
    ntr_p = _round_up(ntr, tt)

    # hoisted, one-time L2 normalization (f32 math -> bf16 matmul operands);
    # train side is emitted already transposed to (d_p, ntr_p).
    test_n = l2_normalize(
        _pad2(test_features.astype(jnp.float32), nte_p, d_p),
        tile=tq, out_dtype=sim_dtype)
    train_nt = l2_normalize_transposed(
        _pad2(train_features.astype(jnp.float32), ntr_p, d_p),
        tile=tt, out_dtype=sim_dtype)

    train_y = jnp.zeros((1, ntr_p), jnp.int32).at[0, :ntr].set(
        train_labels.astype(jnp.int32))
    test_y = jnp.full((nte_p, 1), -1, jnp.int32).at[:nte, 0].set(
        test_labels.astype(jnp.int32))

    correct = pl.pallas_call(
        functools.partial(knn_kernel, ntr=ntr),
        out_shape=jax.ShapeDtypeStruct((nte_p, 1), jnp.float32),
        grid=(nte_p // tq, ntr_p // tt),
        in_specs=[
            pl.BlockSpec((tq, d_p), lambda q, t: (q, 0)),
            pl.BlockSpec((d_p, tt), lambda q, t: (0, t)),
            pl.BlockSpec((1, tt), lambda q, t: (0, t)),
            pl.BlockSpec((tq, 1), lambda q, t: (q, 0)),
        ],
        out_specs=pl.BlockSpec((tq, 1), lambda q, t: (q, 0)),
        scratch_shapes=[pltpu.VMEM((tq, 1), jnp.float32),
                        pltpu.VMEM((tq, 1), jnp.int32)],
        compiler_params=pltpu.CompilerParams(
            # t axis must stay sequential ("arbitrary") for first-argmax ties
            dimension_semantics=("parallel", "arbitrary"),
            vmem_limit_bytes=48 * 1024 * 1024),
    )(test_n, train_nt, train_y, test_y)

    return jnp.sum(correct[:nte, 0]) / nte


# TODO(synk): BaseFramework.forward raises NotImplementedError and
# collect_features/move_batch_to_device are host-side DataLoader plumbing;
# only extract_features (with a synthetic linear encoder) and knn_evaluation
# are compute and are implemented as Pallas kernels.  Fusing L2 normalization
# into the encoder epilogue is a further optional HBM saving left undone.

if __name__ == "__main__":
    key = jax.random.PRNGKey(0)
    k1, k2, k3, k4, kw = jax.random.split(key, 5)

    N_TRAIN, N_TEST = 16, 8
    C, H, W = 4, 16, 16
    D_IN = C * H * W           # 1024 -> single K step with tk=1024
    D_FEAT = 128               # lane-dense feature width (multiple of 128)
    N_CLASSES = 4              # labels << 2^16, packed key is safe

    x_train = jax.random.normal(k1, (N_TRAIN, C, H, W), jnp.float32)
    x_test = jax.random.normal(k2, (N_TEST, C, H, W), jnp.float32)
    y_train = jax.random.randint(k3, (N_TRAIN,), 0, N_CLASSES, dtype=jnp.int32)
    y_test = jax.random.randint(k4, (N_TEST,), 0, N_CLASSES, dtype=jnp.int32)

    # deterministic synthetic encoder parameters
    w_enc = jax.random.normal(kw, (D_IN, D_FEAT), jnp.float32) / jnp.sqrt(D_IN)
    b_enc = jnp.zeros((D_FEAT,), jnp.float32)

    train_feats = extract_features(x_train, w_enc, b_enc)
    test_feats = extract_features(x_test, w_enc, b_enc)

    acc = knn_evaluation(train_feats, y_train, test_feats, y_test)
    acc = jax.block_until_ready(acc)

    # encoder sanity check (loose tolerance: bf16 MXU operands vs f32 XLA ref)
    enc_ref = x_train.reshape(N_TRAIN, D_IN) @ w_enc + b_enc
    assert bool(jnp.allclose(train_feats, enc_ref, rtol=5e-2, atol=5e-2))

    # pure-JAX kNN reference mirroring the kernel's precision policy
    # (rsqrt(ss + eps^2) normalize in f32, bf16 matmul operands, f32 accum);
    # mathematically equivalent to the numpy spec x / (||x|| + 1e-8).
    def ref_knn(trf, try_, tef, tey):
        def norm(x):
            x = x.astype(jnp.float32)
            return x * lax.rsqrt(jnp.sum(x * x, axis=1, keepdims=True)
                                 + _EPS * _EPS)
        trn = norm(trf).astype(jnp.bfloat16)
        ten = norm(tef).astype(jnp.bfloat16)
        dists = jnp.matmul(ten, trn.T, preferred_element_type=jnp.float32)
        preds = try_[jnp.argmax(dists, axis=1)]
        return jnp.mean((preds == tey).astype(jnp.float32))

    ref_acc = ref_knn(train_feats, y_train, test_feats, y_test)
    assert abs(float(acc) - float(ref_acc)) < 1e-6, (float(acc), float(ref_acc))

    print("KERNEL_OK")
</pallas_src>

<mosaic_0001>
module attributes {stable_mosaic.version = 11 : i64} {
  func.func @encoder_kernel(%arg0: i32, %arg1: i32, %arg2: i32, %arg3: memref<16x1024xbf16, #tpu.memory_space<vmem>>, %arg4: memref<1024x128xbf16, #tpu.memory_space<vmem>>, %arg5: memref<1x128xf32, #tpu.memory_space<vmem>>, %arg6: memref<16x128xf32, #tpu.memory_space<vmem>>) attributes {dimension_semantics = [#tpu.dimension_semantics<parallel>, #tpu.dimension_semantics<parallel>, #tpu.dimension_semantics<arbitrary>], iteration_bounds = array<i64: 1, 1, 1>, scalar_prefetch = 0 : i64, scratch_operands = 0 : i64, tpu.core_type = #tpu.core_type<tc>, window_params = [{transform_indices = @transform_0, window_bounds = array<i64: 16, 1024>}, {transform_indices = @transform_1, window_bounds = array<i64: 1024, 128>}, {transform_indices = @transform_2, window_bounds = array<i64: 1, 128>}, {transform_indices = @transform_3, window_bounds = array<i64: 16, 128>}]} {
    %c0_i32 = arith.constant 0 : i32
    %0 = arith.cmpi eq, %arg2, %c0_i32 : i32
    %1 = arith.extui %0 : i1 to i32
    %c0_i32_0 = arith.constant 0 : i32
    %2 = arith.cmpi ne, %1, %c0_i32_0 : i32
    scf.if %2 {
      %cst_10 = arith.constant 0.000000e+00 : f32
      %12 = vector.broadcast %cst_10 : f32 to vector<16x128xf32>
      %c0_11 = arith.constant 0 : index
      %c0_12 = arith.constant 0 : index
      %13 = vector.load %arg6[%c0_11, %c0_12] : memref<16x128xf32, #tpu.memory_space<vmem>>, vector<16x128xf32>
      tpu.vector_store %arg6[%c0_11, %c0_12], %12 {strides = array<i32>} : memref<16x128xf32, #tpu.memory_space<vmem>>, vector<16x128xf32>,
    } else {
    }
    %c0 = arith.constant 0 : index
    %c0_1 = arith.constant 0 : index
    %3 = vector.load %arg6[%c0, %c0_1] : memref<16x128xf32, #tpu.memory_space<vmem>>, vector<16x128xf32>
    %c0_2 = arith.constant 0 : index
    %c0_3 = arith.constant 0 : index
    %4 = vector.load %arg3[%c0_2, %c0_3] : memref<16x1024xbf16, #tpu.memory_space<vmem>>, vector<16x1024xbf16>
    %c0_4 = arith.constant 0 : index
    %c0_5 = arith.constant 0 : index
    %5 = vector.load %arg4[%c0_4, %c0_5] : memref<1024x128xbf16, #tpu.memory_space<vmem>>, vector<1024x128xbf16>
    %cst = arith.constant dense<0.000000e+00> : vector<16x128xf32>
    %6 = tpu.matmul %4, %5, %cst {dimension_numbers = #tpu.dot_dimension_numbers<[1], [0], [0], [1], [0, 0, 1, 1], [], []>} : vector<16x1024xbf16>, vector<1024x128xbf16>, vector<16x128xf32> -> vector<16x128xf32>
    %7 = arith.addf %3, %6 : vector<16x128xf32>
    %c0_6 = arith.constant 0 : index
    %c0_7 = arith.constant 0 : index
    %8 = vector.load %arg6[%c0_6, %c0_7] : memref<16x128xf32, #tpu.memory_space<vmem>>, vector<16x128xf32>
    tpu.vector_store %arg6[%c0_6, %c0_7], %7 {strides = array<i32>} : memref<16x128xf32, #tpu.memory_space<vmem>>, vector<16x128xf32>,
    %c0_i32_8 = arith.constant 0 : i32
    %9 = arith.cmpi eq, %arg2, %c0_i32_8 : i32
    %10 = arith.extui %9 : i1 to i32
    %c0_i32_9 = arith.constant 0 : i32
    %11 = arith.cmpi ne, %10, %c0_i32_9 : i32
    scf.if %11 {
      %c0_10 = arith.constant 0 : index
      %c0_11 = arith.constant 0 : index
      %12 = vector.load %arg6[%c0_10, %c0_11] : memref<16x128xf32, #tpu.memory_space<vmem>>, vector<16x128xf32>
      %c0_12 = arith.constant 0 : index
      %c0_13 = arith.constant 0 : index
      %13 = vector.load %arg5[%c0_12, %c0_13] : memref<1x128xf32, #tpu.memory_space<vmem>>, vector<1x128xf32>
      %14 = vector.broadcast %13 : vector<1x128xf32> to vector<16x128xf32>
      %15 = arith.addf %12, %14 : vector<16x128xf32>
      %c0_14 = arith.constant 0 : index
      %c0_15 = arith.constant 0 : index
      %16 = vector.load %arg6[%c0_14, %c0_15] : memref<16x128xf32, #tpu.memory_space<vmem>>, vector<16x128xf32>
      tpu.vector_store %arg6[%c0_14, %c0_15], %15 {strides = array<i32>} : memref<16x128xf32, #tpu.memory_space<vmem>>, vector<16x128xf32>,
    } else {
    }
    return
  }
  func.func @transform_0(%arg0: i32, %arg1: i32, %arg2: i32) -> (i32, i32) {
    %c0_i32 = arith.constant 0 : i32
    return %arg0, %arg2 : i32, i32
  }
  func.func @transform_1(%arg0: i32, %arg1: i32, %arg2: i32) -> (i32, i32) {
    %c0_i32 = arith.constant 0 : i32
    return %arg2, %arg1 : i32, i32
  }
  func.func @transform_2(%arg0: i32, %arg1: i32, %arg2: i32) -> (i32, i32) {
    %c0_i32 = arith.constant 0 : i32
    %c0_i32_0 = arith.constant 0 : i32
    return %c0_i32, %arg1 : i32, i32
  }
  func.func @transform_3(%arg0: i32, %arg1: i32, %arg2: i32) -> (i32, i32) {
    %c0_i32 = arith.constant 0 : i32
    return %arg0, %arg1 : i32, i32
  }
}

</mosaic_0001>

<llo_original>
// kernel: tpu_custom_call.1
$region0: #{tpu_custom_call.1}
  #allocation0 [shape = 'u32[]', space=smem, size = 0x4, offset = 0x4, fixed_abs, tag = 'smem constant byte address 0x4 - core index']
  #allocation1 [shape = 'u32[72,128]{1,0:T(1,128)}', space=vmem, size = 0x9000, scoped, tag = 'internal scratch']
  %s0 = inlined_call_operand.hbm [shape: bf16[16,1024], index: 0, kind: input, shape index: {}]
  %s1 = inlined_call_operand.hbm [shape: bf16[1024,128], index: 1, kind: input, shape index: {}]
  %s2 = inlined_call_operand.vmem [shape: f32[1,128], index: 2, kind: input, shape index: {}]
  %s3 = inlined_call_operand.hbm [shape: f32[16,128], index: 3, kind: output, shape index: {}]
  %s4 = sld [smem:[#allocation0]]
  $region38: #{tpu_custom_call.1} parent=0
    _
  %s6 = ssub.s32 1, %s4
  %s7 = scalar_select 0, %s6, %s4
  $region1: #{tpu_custom_call.1} parent=0
    #allocation2 [shape = 'u8[32768]{0}', space=vmem, size = 0x8000, scoped, tag = 'input window, operand 0, single buffered']
    #allocation3 [shape = 's32[1]{0}', space=sflag, size = 0x4, scoped, tag = 'scoped memory for tpu_custom_call.1']
    #allocation4 [shape = 's32[1]{0}', space=sflag, size = 0x4, scoped, tag = 'scoped memory for tpu_custom_call.1']
    #allocation5 [shape = 'u8[262144]{0}', space=vmem, size = 0x40000, scoped, tag = 'input window, operand 1, single buffered']
    #allocation6 [shape = 's32[1]{0}', space=sflag, size = 0x4, scoped, tag = 'scoped memory for tpu_custom_call.1']
    #allocation7 [shape = 'u8[8192]{0}', space=vmem, size = 0x2000, scoped, tag = 'output window, operand 0, single buffered']
    %8 = vsyncpa [#allocation3], 0
    %9 = vsyncpa [#allocation6], 0
    %10 = vsyncpa [#allocation4], 0
    // Predicated region
    $region2: #{tpu_custom_call.1} parent=1 // pred_check
      _
    $region3: #{tpu_custom_call.1} parent=1 // pred_check_branch
      %12 = sbr.rel (0) target = $region5
    $region4: #{tpu_custom_call.1} parent=1 // pred_region
      %14 = vsyncadd [#allocation3], 0
      %s15 = sshll.u32 %s0, 4
      %s16 = int_to_ptr.hbm [resolvable:$true] %s15
      %s17 = sshll.u32 [#allocation2], 4
      %s18 = int_to_ptr.vmem [resolvable:$true] %s17
      %23 = dma.hbm_to_vmem [thread:$0]  %s16, 1024, %s18, [#allocation3], 512, 512, 32
    $region5: #{tpu_custom_call.1} parent=1 // pred_fallthru
      _
    // Predicated region
    $region6: #{tpu_custom_call.1} parent=1 // pred_check
      _
    $region7: #{tpu_custom_call.1} parent=1 // pred_check_branch
      %25 = sbr.rel (0) target = $region9
    $region8: #{tpu_custom_call.1} parent=1 // pred_region
      %27 = vsyncadd [#allocation6], 0
      %s28 = sshll.u32 %s1, 4
      %s29 = int_to_ptr.hbm [resolvable:$true] %s28
      %s30 = sshll.u32 [#allocation5], 4
      %s31 = int_to_ptr.vmem [resolvable:$true] %s30
      %36 = dma.hbm_to_vmem [thread:$0]  %s29, 8192, %s31, [#allocation6], 64, 64, 4
    $region9: #{tpu_custom_call.1} parent=1 // pred_fallthru
      _
    // Predicated region
    $region10: #{tpu_custom_call.1} parent=1 // pred_check
      _
    $region11: #{tpu_custom_call.1} parent=1 // pred_check_branch
      %38 = sbr.rel (0) target = $region13
    $region12: #{tpu_custom_call.1} parent=1 // pred_region
      _
    $region13: #{tpu_custom_call.1} parent=1 // pred_fallthru
      _
    // Predicated region
    $region14: #{tpu_custom_call.1} parent=1 // pred_check
      _
    $region15: #{tpu_custom_call.1} parent=1 // pred_check_branch
      %40 = sbr.rel (0) target = $region17
    $region16: #{tpu_custom_call.1} parent=1 // pred_region
      %42 = dma.done [#allocation3], 1024
    $region17: #{tpu_custom_call.1} parent=1 // pred_fallthru
      _
    // Predicated region
    $region18: #{tpu_custom_call.1} parent=1 // pred_check
      _
    $region19: #{tpu_custom_call.1} parent=1 // pred_check_branch
      %44 = sbr.rel (0) target = $region21
    $region20: #{tpu_custom_call.1} parent=1 // pred_region
      %46 = dma.done [#allocation6], 8192
    $region21: #{tpu_custom_call.1} parent=1 // pred_fallthru
      _
    %p47 = scmp.eq.s32.totalorder 0, 0
    // Predicated region
    $region22: #{tpu_custom_call.1} parent=1 // pred_check
      %p48 = pneg %p47
    $region23: #{tpu_custom_call.1} parent=1 // pred_check_branch
      %50 = sbr.rel (%p48) target = $region25
    $region24: #{tpu_custom_call.1} parent=1 // pred_region
      %51 = vst [vmem:[#allocation7] sm:$0xff] 0.0
      %52 = vst [vmem:[#allocation7 + $0x8] sm:$0xff] 0.0
    $region25: #{tpu_custom_call.1} parent=1 // pred_fallthru
      _
    %v53 = vld [vmem:[#allocation7] sm:$0xff]
    %v54 = vld [vmem:[#allocation7 + $0x8] sm:$0xff]
    %v55 = vld [vmem:[#allocation2] sm:$0xff]
    %v56 = vld [vmem:[#allocation2 + $0x8] sm:$0xff]
    %v57 = vld [vmem:[#allocation2 + $0x10] sm:$0xff]
    %v58 = vld [vmem:[#allocation2 + $0x18] sm:$0xff]
    %v59 = vld [vmem:[#allocation2 + $0x20] sm:$0xff]
    %v60 = vld [vmem:[#allocation2 + $0x28] sm:$0xff]
    %v61 = vld [vmem:[#allocation2 + $0x30] sm:$0xff]
    %v62 = vld [vmem:[#allocation2 + $0x38] sm:$0xff]
    %v63 = vld [vmem:[#allocation5] sm:$0xf]
    %v64 = vld [vmem:[#allocation5 + $0x4] sm:$0xf]
    %v65 = vld [vmem:[#allocation5 + $0x8] sm:$0xf]
    %v66 = vld [vmem:[#allocation5 + $0xc] sm:$0xf]
    %v67 = vld [vmem:[#allocation5 + $0x10] sm:$0xf]
    %v68 = vld [vmem:[#allocation5 + $0x14] sm:$0xf]
    %v69 = vld [vmem:[#allocation5 + $0x18] sm:$0xf]
    %v70 = vld [vmem:[#allocation5 + $0x1c] sm:$0xf]
    %v71 = vld [vmem:[#allocation5 + $0x20] sm:$0xf]
    %v72 = vld [vmem:[#allocation5 + $0x24] sm:$0xf]
    %v73 = vld [vmem:[#allocation5 + $0x28] sm:$0xf]
    %v74 = vld [vmem:[#allocation5 + $0x2c] sm:$0xf]
    %v75 = vld [vmem:[#allocation5 + $0x30] sm:$0xf]
    %v76 = vld [vmem:[#allocation5 + $0x34] sm:$0xf]
    %v77 = vld [vmem:[#allocation5 + $0x38] sm:$0xf]
    %v78 = vld [vmem:[#allocation5 + $0x3c] sm:$0xf]
    %v79 = vld [vmem:[#allocation5 + $0x40] sm:$0xf]
    %v80 = vld [vmem:[#allocation5 + $0x44] sm:$0xf]
    %v81 = vld [vmem:[#allocation5 + $0x48] sm:$0xf]
    %v82 = vld [vmem:[#allocation5 + $0x4c] sm:$0xf]
    %v83 = vld [vmem:[#allocation5 + $0x50] sm:$0xf]
    %v84 = vld [vmem:[#allocation5 + $0x54] sm:$0xf]
    %v85 = vld [vmem:[#allocation5 + $0x58] sm:$0xf]
    %v86 = vld [vmem:[#allocation5 + $0x5c] sm:$0xf]
    %v87 = vld [vmem:[#allocation5 + $0x60] sm:$0xf]
    %v88 = vld [vmem:[#allocation5 + $0x64] sm:$0xf]
    %v89 = vld [vmem:[#allocation5 + $0x68] sm:$0xf]
    %v90 = vld [vmem:[#allocation5 + $0x6c] sm:$0xf]
    %v91 = vld [vmem:[#allocation5 + $0x70] sm:$0xf]
    %v92 = vld [vmem:[#allocation5 + $0x74] sm:$0xf]
    %v93 = vld [vmem:[#allocation5 + $0x78] sm:$0xf]
    %v94 = vld [vmem:[#allocation5 + $0x7c] sm:$0xf]
    %v95 = vld [vmem:[#allocation5 + $0x80] sm:$0xf]
    %v96 = vld [vmem:[#allocation5 + $0x84] sm:$0xf]
    %v97 = vld [vmem:[#allocation5 + $0x88] sm:$0xf]
    %v98 = vld [vmem:[#allocation5 + $0x8c] sm:$0xf]
    %v99 = vld [vmem:[#allocation5 + $0x90] sm:$0xf]
    %v100 = vld [vmem:[#allocation5 + $0x94] sm:$0xf]
    %v101 = vld [vmem:[#allocation5 + $0x98] sm:$0xf]
    %v102 = vld [vmem:[#allocation5 + $0x9c] sm:$0xf]
    %v103 = vld [vmem:[#allocation5 + $0xa0] sm:$0xf]
    %v104 = vld [vmem:[#allocation5 + $0xa4] sm:$0xf]
    %v105 = vld [vmem:[#allocation5 + $0xa8] sm:$0xf]
    %v106 = vld [vmem:[#allocation5 + $0xac] sm:$0xf]
    %v107 = vld [vmem:[#allocation5 + $0xb0] sm:$0xf]
    %v108 = vld [vmem:[#allocation5 + $0xb4] sm:$0xf]
    %v109 = vld [vmem:[#allocation5 + $0xb8] sm:$0xf]
    %v110 = vld [vmem:[#allocation5 + $0xbc] sm:$0xf]
    %v111 = vld [vmem:[#allocation5 + $0xc0] sm:$0xf]
    %v112 = vld [vmem:[#allocation5 + $0xc4] sm:$0xf]
    %v113 = vld [vmem:[#allocation5 + $0xc8] sm:$0xf]
    %v114 = vld [vmem:[#allocation5 + $0xcc] sm:$0xf]
    %v115 = vld [vmem:[#allocation5 + $0xd0] sm:$0xf]
    %v116 = vld [vmem:[#allocation5 + $0xd4] sm:$0xf]
    %v117 = vld [vmem:[#allocation5 + $0xd8] sm:$0xf]
    %v118 = vld [vmem:[#allocation5 + $0xdc] sm:$0xf]
    %v119 = vld [vmem:[#allocation5 + $0xe0] sm:$0xf]
    %v120 = vld [vmem:[#allocation5 + $0xe4] sm:$0xf]
    %v121 = vld [vmem:[#allocation5 + $0xe8] sm:$0xf]
    %v122 = vld [vmem:[#allocation5 + $0xec] sm:$0xf]
    %v123 = vld [vmem:[#allocation5 + $0xf0] sm:$0xf]
    %v124 = vld [vmem:[#allocation5 + $0xf4] sm:$0xf]
    %v125 = vld [vmem:[#allocation5 + $0xf8] sm:$0xf]
    %v126 = vld [vmem:[#allocation5 + $0xfc] sm:$0xf]
    %v127 = vld [vmem:[#allocation5 + $0x100] sm:$0xf]
    %v128 = vld [vmem:[#allocation5 + $0x104] sm:$0xf]
    %v129 = vld [vmem:[#allocation5 + $0x108] sm:$0xf]
    %v130 = vld [vmem:[#allocation5 + $0x10c] sm:$0xf]
    %v131 = vld [vmem:[#allocation5 + $0x110] sm:$0xf]
    %v132 = vld [vmem:[#allocation5 + $0x114] sm:$0xf]
    %v133 = vld [vmem:[#allocation5 + $0x118] sm:$0xf]
    %v134 = vld [vmem:[#allocation5 + $0x11c] sm:$0xf]
    %v135 = vld [vmem:[#allocation5 + $0x120] sm:$0xf]
    %v136 = vld [vmem:[#allocation5 + $0x124] sm:$0xf]
    %v137 = vld [vmem:[#allocation5 + $0x128] sm:$0xf]
    %v138 = vld [vmem:[#allocation5 + $0x12c] sm:$0xf]
    %v139 = vld [vmem:[#allocation5 + $0x130] sm:$0xf]
    %v140 = vld [vmem:[#allocation5 + $0x134] sm:$0xf]
    %v141 = vld [vmem:[#allocation5 + $0x138] sm:$0xf]
    %v142 = vld [vmem:[#allocation5 + $0x13c] sm:$0xf]
    %v143 = vld [vmem:[#allocation5 + $0x140] sm:$0xf]
    %v144 = vld [vmem:[#allocation5 + $0x144] sm:$0xf]
    %v145 = vld [vmem:[#allocation5 + $0x148] sm:$0xf]
    %v146 = vld [vmem:[#allocation5 + $0x14c] sm:$0xf]
    %v147 = vld [vmem:[#allocation5 + $0x150] sm:$0xf]
    %v148 = vld [vmem:[#allocation5 + $0x154] sm:$0xf]
    %v149 = vld [vmem:[#allocation5 + $0x158] sm:$0xf]
    %v150 = vld [vmem:[#allocation5 + $0x15c] sm:$0xf]
    %v151 = vld [vmem:[#allocation5 + $0x160] sm:$0xf]
    %v152 = vld [vmem:[#allocation5 + $0x164] sm:$0xf]
    %v153 = vld [vmem:[#allocation5 + $0x168] sm:$0xf]
    %v154 = vld [vmem:[#allocation5 + $0x16c] sm:$0xf]
    %v155 = vld [vmem:[#allocation5 + $0x170] sm:$0xf]
    %v156 = vld [vmem:[#allocation5 + $0x174] sm:$0xf]
    %v157 = vld [vmem:[#allocation5 + $0x178] sm:$0xf]
    %v158 = vld [vmem:[#allocation5 + $0x17c] sm:$0xf]
    %v159 = vld [vmem:[#allocation5 + $0x180] sm:$0xf]
    %v160 = vld [vmem:[#allocation5 + $0x184] sm:$0xf]
    %v161 = vld [vmem:[#allocation5 + $0x188] sm:$0xf]
    %v162 = vld [vmem:[#allocation5 + $0x18c] sm:$0xf]
    %v163 = vld [vmem:[#allocation5 + $0x190] sm:$0xf]
    %v164 = vld [vmem:[#allocation5 + $0x194] sm:$0xf]
    %v165 = vld [vmem:[#allocation5 + $0x198] sm:$0xf]
    %v166 = vld [vmem:[#allocation5 + $0x19c] sm:$0xf]
    %v167 = vld [vmem:[#allocation5 + $0x1a0] sm:$0xf]
    %v168 = vld [vmem:[#allocation5 + $0x1a4] sm:$0xf]
    %v169 = vld [vmem:[#allocation5 + $0x1a8] sm:$0xf]
    %v170 = vld [vmem:[#allocation5 + $0x1ac] sm:$0xf]
    %v171 = vld [vmem:[#allocation5 + $0x1b0] sm:$0xf]
    %v172 = vld [vmem:[#allocation5 + $0x1b4] sm:$0xf]
    %v173 = vld [vmem:[#allocation5 + $0x1b8] sm:$0xf]
    %v174 = vld [vmem:[#allocation5 + $0x1bc] sm:$0xf]
    %v175 = vld [vmem:[#allocation5 + $0x1c0] sm:$0xf]
    %v176 = vld [vmem:[#allocation5 + $0x1c4] sm:$0xf]
    %v177 = vld [vmem:[#allocation5 + $0x1c8] sm:$0xf]
    %v178 = vld [vmem:[#allocation5 + $0x1cc] sm:$0xf]
    %v179 = vld [vmem:[#allocation5 + $0x1d0] sm:$0xf]
    %v180 = vld [vmem:[#allocation5 + $0x1d4] sm:$0xf]
    %v181 = vld [vmem:[#allocation5 + $0x1d8] sm:$0xf]
    %v182 = vld [vmem:[#allocation5 + $0x1dc] sm:$0xf]
    %v183 = vld [vmem:[#allocation5 + $0x1e0] sm:$0xf]
    %v184 = vld [vmem:[#allocation5 + $0x1e4] sm:$0xf]
    %v185 = vld [vmem:[#allocation5 + $0x1e8] sm:$0xf]
    %v186 = vld [vmem:[#allocation5 + $0x1ec] sm:$0xf]
    %v187 = vld [vmem:[#allocation5 + $0x1f0] sm:$0xf]
    %v188 = vld [vmem:[#allocation5 + $0x1f4] sm:$0xf]
    %v189 = vld [vmem:[#allocation5 + $0x1f8] sm:$0xf]
    %v190 = vld [vmem:[#allocation5 + $0x1fc] sm:$0xf]
    %v199 = vunpack.c.l.b16 %v55
    %v200 = vunpack.c.h.b16 %v55
    %v201 = vunpack.c.l.b16 %v56
    %v202 = vunpack.c.h.b16 %v56
    %v203 = vunpack.c.l.b16 %v57
    %v204 = vunpack.c.h.b16 %v57
    %v205 = vunpack.c.l.b16 %v58
    %v206 = vunpack.c.h.b16 %v58
    %v207 = vunpack.c.l.b16 %v59
    %v208 = vunpack.c.h.b16 %v59
    %v209 = vunpack.c.l.b16 %v60
    %v210 = vunpack.c.h.b16 %v60
    %v211 = vunpack.c.l.b16 %v61
    %v212 = vunpack.c.h.b16 %v61
    %v213 = vunpack.c.l.b16 %v62
    %v214 = vunpack.c.h.b16 %v62
    %v215 = vpack.c.b16 %v207, %v199
    %v216 = vpack.c.b16 %v208, %v200
    %v217 = vpack.c.b16 %v209, %v201
    %v218 = vpack.c.b16 %v210, %v202
    %v219 = vpack.c.b16 %v211, %v203
    %v220 = vpack.c.b16 %v212, %v204
    %v221 = vpack.c.b16 %v213, %v205
    %v222 = vpack.c.b16 %v214, %v206
    %v359 = vunpack.c.l.b16 %v63
    %v360 = vunpack.c.l.b16 %v64
    %v361 = vunpack.c.l.b16 %v65
    %v362 = vunpack.c.l.b16 %v66
    %v363 = vunpack.c.l.b16 %v67
    %v364 = vunpack.c.l.b16 %v68
    %v365 = vunpack.c.l.b16 %v69
    %v366 = vunpack.c.l.b16 %v70
    %v367 = vunpack.c.l.b16 %v71
    %v368 = vunpack.c.l.b16 %v72
    %v369 = vunpack.c.l.b16 %v73
    %v370 = vunpack.c.l.b16 %v74
    %v371 = vunpack.c.l.b16 %v75
    %v372 = vunpack.c.l.b16 %v76
    %v373 = vunpack.c.l.b16 %v77
    %v374 = vunpack.c.l.b16 %v78
    %v375 = vunpack.c.l.b16 %v79
    %v376 = vunpack.c.l.b16 %v80
    %v377 = vunpack.c.l.b16 %v81
    %v378 = vunpack.c.l.b16 %v82
    %v379 = vunpack.c.l.b16 %v83
    %v380 = vunpack.c.l.b16 %v84
    %v381 = vunpack.c.l.b16 %v85
    %v382 = vunpack.c.l.b16 %v86
    %v383 = vunpack.c.l.b16 %v87
    %v384 = vunpack.c.l.b16 %v88
    %v385 = vunpack.c.l.b16 %v89
    %v386 = vunpack.c.l.b16 %v90
    %v387 = vunpack.c.l.b16 %v91
    %v388 = vunpack.c.l.b16 %v92
    %v389 = vunpack.c.l.b16 %v93
    %v390 = vunpack.c.l.b16 %v94
    %v391 = vunpack.c.l.b16 %v95
    %v392 = vunpack.c.l.b16 %v96
    %v393 = vunpack.c.l.b16 %v97
    %v394 = vunpack.c.l.b16 %v98
    %v395 = vunpack.c.l.b16 %v99
    %v396 = vunpack.c.l.b16 %v100
    %v397 = vunpack.c.l.b16 %v101
    %v398 = vunpack.c.l.b16 %v102
    %v399 = vunpack.c.l.b16 %v103
    %v400 = vunpack.c.l.b16 %v104
    %v401 = vunpack.c.l.b16 %v105
    %v402 = vunpack.c.l.b16 %v106
    %v403 = vunpack.c.l.b16 %v107
    %v404 = vunpack.c.l.b16 %v108
    %v405 = vunpack.c.l.b16 %v109
    %v406 = vunpack.c.l.b16 %v110
    %v407 = vunpack.c.l.b16 %v111
    %v408 = vunpack.c.l.b16 %v112
    %v409 = vunpack.c.l.b16 %v113
    %v410 = vunpack.c.l.b16 %v114
    %v411 = vunpack.c.l.b16 %v115
    %v412 = vunpack.c.l.b16 %v116
    %v413 = vunpack.c.l.b16 %v117
    %v414 = vunpack.c.l.b16 %v118
    %v415 = vunpack.c.l.b16 %v119
    %v416 = vunpack.c.l.b16 %v120
    %v417 = vunpack.c.l.b16 %v121
    %v418 = vunpack.c.l.b16 %v122
    %v419 = vunpack.c.l.b16 %v123
    %v420 = vunpack.c.l.b16 %v124
    %v421 = vunpack.c.l.b16 %v125
    %v422 = vunpack.c.l.b16 %v126
    %v423 = vunpack.c.l.b16 %v127
    %v424 = vunpack.c.l.b16 %v128
    %v425 = vunpack.c.l.b16 %v129
    %v426 = vunpack.c.l.b16 %v130
    %v427 = vunpack.c.l.b16 %v131
    %v428 = vunpack.c.l.b16 %v132
    %v429 = vunpack.c.l.b16 %v133
    %v430 = vunpack.c.l.b16 %v134
    %v431 = vunpack.c.l.b16 %v135
    %v432 = vunpack.c.l.b16 %v136
    %v433 = vunpack.c.l.b16 %v137
    %v434 = vunpack.c.l.b16 %v138
    %v435 = vunpack.c.l.b16 %v139
    %v436 = vunpack.c.l.b16 %v140
    %v437 = vunpack.c.l.b16 %v141
    %v438 = vunpack.c.l.b16 %v142
    %v439 = vunpack.c.l.b16 %v143
    %v440 = vunpack.c.l.b16 %v144
    %v441 = vunpack.c.l.b16 %v145
    %v442 = vunpack.c.l.b16 %v146
    %v443 = vunpack.c.l.b16 %v147
    %v444 = vunpack.c.l.b16 %v148
    %v445 = vunpack.c.l.b16 %v149
    %v446 = vunpack.c.l.b16 %v150
    %v447 = vunpack.c.l.b16 %v151
    %v448 = vunpack.c.l.b16 %v152
    %v449 = vunpack.c.l.b16 %v153
    %v450 = vunpack.c.l.b16 %v154
    %v451 = vunpack.c.l.b16 %v155
    %v452 = vunpack.c.l.b16 %v156
    %v453 = vunpack.c.l.b16 %v157
    %v454 = vunpack.c.l.b16 %v158
    %v455 = vunpack.c.l.b16 %v159
    %v456 = vunpack.c.l.b16 %v160
    %v457 = vunpack.c.l.b16 %v161
    %v458 = vunpack.c.l.b16 %v162
    %v459 = vunpack.c.l.b16 %v163
    %v460 = vunpack.c.l.b16 %v164
    %v461 = vunpack.c.l.b16 %v165
    %v462 = vunpack.c.l.b16 %v166
    %v463 = vunpack.c.l.b16 %v167
    %v464 = vunpack.c.l.b16 %v168
    %v465 = vunpack.c.l.b16 %v169
    %v466 = vunpack.c.l.b16 %v170
    %v467 = vunpack.c.l.b16 %v171
    %v468 = vunpack.c.l.b16 %v172
    %v469 = vunpack.c.l.b16 %v173
    %v470 = vunpack.c.l.b16 %v174
    %v471 = vunpack.c.l.b16 %v175
    %v472 = vunpack.c.l.b16 %v176
    %v473 = vunpack.c.l.b16 %v177
    %v474 = vunpack.c.l.b16 %v178
    %v475 = vunpack.c.l.b16 %v179
    %v476 = vunpack.c.l.b16 %v180
    %v477 = vunpack.c.l.b16 %v181
    %v478 = vunpack.c.l.b16 %v182
    %v479 = vunpack.c.l.b16 %v183
    %v480 = vunpack.c.l.b16 %v184
    %v481 = vunpack.c.l.b16 %v185
    %v482 = vunpack.c.l.b16 %v186
    %v483 = vunpack.c.l.b16 %v187
    %v484 = vunpack.c.l.b16 %v188
    %v485 = vunpack.c.l.b16 %v189
    %v486 = vunpack.c.l.b16 %v190
    %v487 = vpack.c.b16 %v360, %v359
    %v488 = vpack.c.b16 %v362, %v361
    %v489 = vpack.c.b16 %v364, %v363
    %v490 = vpack.c.b16 %v366, %v365
    %v491 = vpack.c.b16 %v368, %v367
    %v492 = vpack.c.b16 %v370, %v369
    %v493 = vpack.c.b16 %v372, %v371
    %v494 = vpack.c.b16 %v374, %v373
    %v495 = vpack.c.b16 %v376, %v375
    %v496 = vpack.c.b16 %v378, %v377
    %v497 = vpack.c.b16 %v380, %v379
    %v498 = vpack.c.b16 %v382, %v381
    %v499 = vpack.c.b16 %v384, %v383
    %v500 = vpack.c.b16 %v386, %v385
    %v501 = vpack.c.b16 %v388, %v387
    %v502 = vpack.c.b16 %v390, %v389
    %v503 = vpack.c.b16 %v392, %v391
    %v504 = vpack.c.b16 %v394, %v393
    %v505 = vpack.c.b16 %v396, %v395
    %v506 = vpack.c.b16 %v398, %v397
    %v507 = vpack.c.b16 %v400, %v399
    %v508 = vpack.c.b16 %v402, %v401
    %v509 = vpack.c.b16 %v404, %v403
    %v510 = vpack.c.b16 %v406, %v405
    %v511 = vpack.c.b16 %v408, %v407
    %v512 = vpack.c.b16 %v410, %v409
    %v513 = vpack.c.b16 %v412, %v411
    %v514 = vpack.c.b16 %v414, %v413
    %v515 = vpack.c.b16 %v416, %v415
    %v516 = vpack.c.b16 %v418, %v417
    %v517 = vpack.c.b16 %v420, %v419
    %v518 = vpack.c.b16 %v422, %v421
    %v519 = vpack.c.b16 %v424, %v423
    %v520 = vpack.c.b16 %v426, %v425
    %v521 = vpack.c.b16 %v428, %v427
    %v522 = vpack.c.b16 %v430, %v429
    %v523 = vpack.c.b16 %v432, %v431
    %v524 = vpack.c.b16 %v434, %v433
    %v525 = vpack.c.b16 %v436, %v435
    %v526 = vpack.c.b16 %v438, %v437
    %v527 = vpack.c.b16 %v440, %v439
    %v528 = vpack.c.b16 %v442, %v441
    %v529 = vpack.c.b16 %v444, %v443
    %v530 = vpack.c.b16 %v446, %v445
    %v531 = vpack.c.b16 %v448, %v447
    %v532 = vpack.c.b16 %v450, %v449
    %v533 = vpack.c.b16 %v452, %v451
    %v534 = vpack.c.b16 %v454, %v453
    %v535 = vpack.c.b16 %v456, %v455
    %v536 = vpack.c.b16 %v458, %v457
    %v537 = vpack.c.b16 %v460, %v459
    %v538 = vpack.c.b16 %v462, %v461
    %v539 = vpack.c.b16 %v464, %v463
    %v540 = vpack.c.b16 %v466, %v465
    %v541 = vpack.c.b16 %v468, %v467
    %v542 = vpack.c.b16 %v470, %v469
    %v543 = vpack.c.b16 %v472, %v471
    %v544 = vpack.c.b16 %v474, %v473
    %v545 = vpack.c.b16 %v476, %v475
    %v546 = vpack.c.b16 %v478, %v477
    %v547 = vpack.c.b16 %v480, %v479
    %v548 = vpack.c.b16 %v482, %v481
    %v549 = vpack.c.b16 %v484, %v483
    %v550 = vpack.c.b16 %v486, %v485
    %615 = vmatpush.bf16.msra.mxu0 %v494
    %616 = vmatpush.bf16.msra.mxu0 %v493
    %617 = vmatpush.bf16.msra.mxu0 %v492
    %618 = vmatpush.bf16.msra.mxu0 %v491
    %619 = vmatpush.bf16.msra.mxu0 %v490
    %620 = vmatpush.bf16.msra.mxu0 %v489
    %621 = vmatpush.bf16.msra.mxu0 %v488
    %622 = vmatpush.bf16.msra.mxu0 %v487
    %623 = vmatmul.bf16.gmra.mxu0 %v215
    %v624 = vpop.f32.mrf.mxu0
    %v625 = vadd.f32 0.0, %v624
    %v626 = vpop.f32.mrf.mxu0
    %v627 = vadd.f32 0.0, %v626
    %628 = vdwg.mxu0
    %629 = vmatpush.bf16.msra.mxu0 %v502
    %630 = vmatpush.bf16.msra.mxu0 %v501
    %631 = vmatpush.bf16.msra.mxu0 %v500
    %632 = vmatpush.bf16.msra.mxu0 %v499
    %633 = vmatpush.bf16.msra.mxu0 %v498
    %634 = vmatpush.bf16.msra.mxu0 %v497
    %635 = vmatpush.bf16.msra.mxu0 %v496
    %636 = vmatpush.bf16.msra.mxu0 %v495
    %637 = vmatmul.bf16.gmra.mxu0 %v216
    %v638 = vpop.f32.mrf.mxu0
    %v639 = vadd.f32 %v625, %v638
    %v640 = vpop.f32.mrf.mxu0
    %v641 = vadd.f32 %v627, %v640
    %642 = vdwg.mxu0
    %643 = vmatpush.bf16.msra.mxu0 %v510
    %644 = vmatpush.bf16.msra.mxu0 %v509
    %645 = vmatpush.bf16.msra.mxu0 %v508
    %646 = vmatpush.bf16.msra.mxu0 %v507
    %647 = vmatpush.bf16.msra.mxu0 %v506
    %648 = vmatpush.bf16.msra.mxu0 %v505
    %649 = vmatpush.bf16.msra.mxu0 %v504
    %650 = vmatpush.bf16.msra.mxu0 %v503
    %651 = vmatmul.bf16.gmra.mxu0 %v217
    %v652 = vpop.f32.mrf.mxu0
    %v653 = vadd.f32 %v639, %v652
    %v654 = vpop.f32.mrf.mxu0
    %v655 = vadd.f32 %v641, %v654
    %656 = vdwg.mxu0
    %657 = vmatpush.bf16.msra.mxu0 %v518
    %658 = vmatpush.bf16.msra.mxu0 %v517
    %659 = vmatpush.bf16.msra.mxu0 %v516
    %660 = vmatpush.bf16.msra.mxu0 %v515
    %661 = vmatpush.bf16.msra.mxu0 %v514
    %662 = vmatpush.bf16.msra.mxu0 %v513
    %663 = vmatpush.bf16.msra.mxu0 %v512
    %664 = vmatpush.bf16.msra.mxu0 %v511
    %665 = vmatmul.bf16.gmra.mxu0 %v218
    %v666 = vpop.f32.mrf.mxu0
    %v667 = vadd.f32 %v653, %v666
    %v668 = vpop.f32.mrf.mxu0
    %v669 = vadd.f32 %v655, %v668
    %670 = vdwg.mxu0
    %671 = vmatpush.bf16.msra.mxu0 %v526
    %672 = vmatpush.bf16.msra.mxu0 %v525
    %673 = vmatpush.bf16.msra.mxu0 %v524
    %674 = vmatpush.bf16.msra.mxu0 %v523
    %675 = vmatpush.bf16.msra.mxu0 %v522
    %676 = vmatpush.bf16.msra.mxu0 %v521
    %677 = vmatpush.bf16.msra.mxu0 %v520
    %678 = vmatpush.bf16.msra.mxu0 %v519
    %679 = vmatmul.bf16.gmra.mxu0 %v219
    %v680 = vpop.f32.mrf.mxu0
    %v681 = vadd.f32 %v667, %v680
    %v682 = vpop.f32.mrf.mxu0
    %v683 = vadd.f32 %v669, %v682
    %684 = vdwg.mxu0
    %685 = vmatpush.bf16.msra.mxu0 %v534
    %686 = vmatpush.bf16.msra.mxu0 %v533
    %687 = vmatpush.bf16.msra.mxu0 %v532
    %688 = vmatpush.bf16.msra.mxu0 %v531
    %689 = vmatpush.bf16.msra.mxu0 %v530
    %690 = vmatpush.bf16.msra.mxu0 %v529
    %691 = vmatpush.bf16.msra.mxu0 %v528
    %692 = vmatpush.bf16.msra.mxu0 %v527
    %693 = vmatmul.bf16.gmra.mxu0 %v220
    %v694 = vpop.f32.mrf.mxu0
    %v695 = vadd.f32 %v681, %v694
    %v696 = vpop.f32.mrf.mxu0
    %v697 = vadd.f32 %v683, %v696
    %698 = vdwg.mxu0
    %699 = vmatpush.bf16.msra.mxu0 %v542
    %700 = vmatpush.bf16.msra.mxu0 %v541
    %701 = vmatpush.bf16.msra.mxu0 %v540
    %702 = vmatpush.bf16.msra.mxu0 %v539
    %703 = vmatpush.bf16.msra.mxu0 %v538
    %704 = vmatpush.bf16.msra.mxu0 %v537
    %705 = vmatpush.bf16.msra.mxu0 %v536
    %706 = vmatpush.bf16.msra.mxu0 %v535
    %707 = vmatmul.bf16.gmra.mxu0 %v221
    %v708 = vpop.f32.mrf.mxu0
    %v709 = vadd.f32 %v695, %v708
    %v710 = vpop.f32.mrf.mxu0
    %v711 = vadd.f32 %v697, %v710
    %712 = vdwg.mxu0
    %713 = vmatpush.bf16.msra.mxu0 %v550
    %714 = vmatpush.bf16.msra.mxu0 %v549
    %715 = vmatpush.bf16.msra.mxu0 %v548
    %716 = vmatpush.bf16.msra.mxu0 %v547
    %717 = vmatpush.bf16.msra.mxu0 %v546
    %718 = vmatpush.bf16.msra.mxu0 %v545
    %719 = vmatpush.bf16.msra.mxu0 %v544
    %720 = vmatpush.bf16.msra.mxu0 %v543
    %721 = vmatmul.bf16.gmra.mxu0 %v222
    %v722 = vpop.f32.mrf.mxu0
    %v723 = vadd.f32 %v709, %v722
    %v724 = vpop.f32.mrf.mxu0
    %v725 = vadd.f32 %v711, %v724
    %726 = vdwg.mxu0
    %v727 = vadd.f32 %v53, %v723
    %v728 = vadd.f32 %v54, %v725
    %729 = vst [vmem:[#allocation7] sm:$0xff] %v727
    %730 = vst [vmem:[#allocation7 + $0x8] sm:$0xff] %v728
    // Predicated region
    $region26: #{tpu_custom_call.1} parent=1 // pred_check
      %p731 = pneg %p47
    $region27: #{tpu_custom_call.1} parent=1 // pred_check_branch
      %733 = sbr.rel (%p731) target = $region29
    $region28: #{tpu_custom_call.1} parent=1 // pred_region
      %v734 = vld [vmem:[#allocation7] sm:$0xff]
      %v735 = vld [vmem:[#allocation7 + $0x8] sm:$0xff]
      %v736 = vld [vmem:[%s2] sm:$0x1]
      %v738 = vperm.slane %v736, 0
      %v740 = vadd.f32 %v734, %v738
      %v741 = vadd.f32 %v735, %v738
      %742 = vst [vmem:[#allocation7] sm:$0xff] %v740
      %743 = vst [vmem:[#allocation7 + $0x8] sm:$0xff] %v741
    $region29: #{tpu_custom_call.1} parent=1 // pred_fallthru
      _
    // Predicated region
    $region30: #{tpu_custom_call.1} parent=1 // pred_check
      _
    $region31: #{tpu_custom_call.1} parent=1 // pred_check_branch
      %745 = sbr.rel (0) target = $region33
    $region32: #{tpu_custom_call.1} parent=1 // pred_region
      %747 = vsyncadd [#allocation4], 0
      %s748 = sshll.u32 [#allocation7], 4
      %s749 = int_to_ptr.vmem [resolvable:$true] %s748
      %s750 = sshll.u32 %s3, 4
      %s751 = int_to_ptr.hbm [resolvable:$true] %s750
      %756 = dma.vmem_to_hbm [thread:$0]  %s749, 256, %s751, [#allocation4], 128, 128, 8
    $region33: #{tpu_custom_call.1} parent=1 // pred_fallthru
      _
    // Predicated region
    $region34: #{tpu_custom_call.1} parent=1 // pred_check
      _
    $region35: #{tpu_custom_call.1} parent=1 // pred_check_branch
      %758 = sbr.rel (0) target = $region37
    $region36: #{tpu_custom_call.1} parent=1 // pred_region
      %760 = dma.done [#allocation4], 256
    $region37: #{tpu_custom_call.1} parent=1 // pred_fallthru
      _
    %761 = vsyncpa [#allocation3], 1
    %762 = vsyncpa [#allocation6], 1
    %763 = vsyncpa [#allocation4], 1

</llo_original>
